<compile_context>
chip_gen: v5e
topology: v5e:2x2
jax: 0.10.0
libtpu: 0.0.40
codegen_flags: <defaults>
</compile_context>

<pallas_src>
import functools

import jax
import jax.numpy as jnp
from jax.experimental import pallas as pl
from jax.experimental.pallas import tpu as pltpu


# ----------------------------------------------------------------------------
# Kernels
# ----------------------------------------------------------------------------
def _reduce_head_kernel(x_ref, w_ref, b_ref, out_ref, acc_ref, *,
                        aggregation_strat: str, seq_len: int):
    """Streaming mean/max over L + classifier matmul at the final L step.

    x_ref:  [TB, TL, H]   hidden-state tile (native dtype)
    w_ref:  [H,  Cp]      classifier weight (transposed + lane-padded)
    b_ref:  [1,  Cp]      classifier bias (lane-padded)
    out_ref:[TB, Cp]      logits tile (f32)
    acc_ref:[TB, H]       f32 running sum / running max (VMEM scratch)
    """
    l = pl.program_id(1)

    @pl.when(l == 0)
    def _init():
        if aggregation_strat == "max":
            acc_ref[...] = jnp.full(acc_ref.shape, -jnp.inf, jnp.float32)
        else:
            acc_ref[...] = jnp.zeros(acc_ref.shape, jnp.float32)

    x = x_ref[...]                                    # (TB, TL, H) native dtype
    if aggregation_strat == "mean":
        # Sublane (XLU) reduction with f32 accumulation; no f32 copy of tile.
        acc_ref[...] = acc_ref[...] + jnp.sum(x, axis=1, dtype=jnp.float32)
    elif aggregation_strat == "max":
        # max is order-preserving -> reduce in native dtype, cast the small
        # [TB, H] result only.
        acc_ref[...] = jnp.maximum(acc_ref[...],
                                   jnp.max(x, axis=1).astype(jnp.float32))
    else:
        raise ValueError(
            f"Aggregation strategy `{aggregation_strat}` not supported here.")

    @pl.when(l == pl.num_programs(1) - 1)
    def _finalize():
        agg = acc_ref[...]
        if aggregation_strat == "mean":
            agg = agg * (1.0 / float(seq_len))        # divide once on [TB, H]
        w = w_ref[...].astype(jnp.float32)
        b = b_ref[...].astype(jnp.float32)
        out_ref[...] = (jnp.dot(agg, w, preferred_element_type=jnp.float32)
                        + b).astype(out_ref.dtype)


def _select_head_kernel(x_ref, w_ref, b_ref, out_ref, *, row: int):
    """'last'/'first': only one small L-block is DMA'd; pick `row` inside it.

    x_ref:  [TB, TLsel, H]  single sequence block containing the wanted step
    w_ref:  [H, Cp]; b_ref: [1, Cp]; out_ref: [TB, Cp]
    """
    agg = x_ref[:, row, :].astype(jnp.float32)        # (TB, H)
    w = w_ref[...].astype(jnp.float32)
    b = b_ref[...].astype(jnp.float32)
    out_ref[...] = (jnp.dot(agg, w, preferred_element_type=jnp.float32)
                    + b).astype(out_ref.dtype)


# ----------------------------------------------------------------------------
# Wrapper
# ----------------------------------------------------------------------------
def _round_up(x: int, m: int) -> int:
    return ((x + m - 1) // m) * m


def _pick_seq_tile(L: int, per_row_bytes: int,
                   target_bytes: int = 4 << 20) -> int:
    """Largest divisor of L that is 8-aligned (or == L) and <= ~4 MiB/tile."""
    max_rows = max(1, target_bytes // max(1, per_row_bytes))
    best = None
    for tl in range(1, L + 1):
        if L % tl:
            continue
        if tl != L and tl % 8 != 0:
            continue
        if tl <= max_rows:
            best = tl
    return best if best is not None else L


def cookbook_classification_head(reprs: jax.Array,
                                 weight: jax.Array,
                                 bias: jax.Array,
                                 aggregation_strat: str = "mean",
                                 *,
                                 seq_tile: int | None = None) -> jax.Array:
    """reprs: [B, L, H]; weight: [C, H] (torch layout); bias: [C] -> logits [B, C]."""
    B, L, H = reprs.shape
    C, H_w = weight.shape
    assert H_w == H, (weight.shape, H)
    assert bias.shape == (C,)

    # Lane-pad the class dim to a multiple of 128: dense (unmasked) output
    # stores and a non-degenerate MXU N dim. Sliced back to C at the end.
    C_pad = _round_up(C, 128)
    # TODO(synk): in production pre-transpose/pad the classifier params once at
    # parameter-load time instead of per call; done here to stay self-contained.
    w_pad = jnp.zeros((H, C_pad), dtype=weight.dtype).at[:, :C].set(weight.T)
    b_pad = jnp.zeros((1, C_pad), dtype=bias.dtype).at[:, :C].set(bias[None, :])

    TB = B if B <= 8 else 8
    nb = pl.cdiv(B, TB)
    itemsize = reprs.dtype.itemsize
    w_bytes = H * C_pad * w_pad.dtype.itemsize

    if aggregation_strat in ("last", "first"):
        # Read ONLY the L-block containing the wanted timestep.
        TL = L if L < 8 else 8
        if aggregation_strat == "last":
            lblk, row = (L - 1) // TL, (L - 1) % TL
        else:
            lblk, row = 0, 0
        kernel = functools.partial(_select_head_kernel, row=row)
        grid = (nb,)
        in_specs = [
            pl.BlockSpec((TB, TL, H), lambda b: (b, lblk, 0)),
            pl.BlockSpec((H, C_pad), lambda b: (0, 0)),
            pl.BlockSpec((1, C_pad), lambda b: (0, 0)),
        ]
        out_specs = pl.BlockSpec((TB, C_pad), lambda b: (b, 0))
        scratch_shapes = []
        dims = ("parallel",)
        x_tile_bytes = TB * TL * H * itemsize
        bytes_accessed = nb * x_tile_bytes + w_bytes + B * C_pad * 4
        flops = 2 * B * H * C_pad
    elif aggregation_strat in ("mean", "max"):
        TL = seq_tile if seq_tile is not None else _pick_seq_tile(
            L, TB * H * itemsize)
        assert L % TL == 0 and (TL == L or TL % 8 == 0), (L, TL)
        nl = L // TL
        kernel = functools.partial(_reduce_head_kernel,
                                   aggregation_strat=aggregation_strat,
                                   seq_len=L)
        grid = (nb, nl)
        in_specs = [
            pl.BlockSpec((TB, TL, H), lambda b, l: (b, l, 0)),
            # Same block index for every l -> stays resident (no re-DMA per step).
            pl.BlockSpec((H, C_pad), lambda b, l: (0, 0)),
            pl.BlockSpec((1, C_pad), lambda b, l: (0, 0)),
        ]
        out_specs = pl.BlockSpec((TB, C_pad), lambda b, l: (b, 0))
        scratch_shapes = [pltpu.VMEM((TB, H), jnp.float32)]
        dims = ("parallel", "arbitrary")
        x_tile_bytes = TB * TL * H * itemsize
        bytes_accessed = B * L * H * itemsize + w_bytes + B * C_pad * 4
        flops = B * L * H + 2 * B * H * C_pad
    else:
        raise ValueError(
            f"Aggregation strategy `{aggregation_strat}` not supported.")

    # VMEM budget: 2x double-buffered input tile + weights + bias + output +
    # accumulator, with headroom.  Floor 16 MiB, cap well under v7x's 64 MiB.
    vmem_need = (2 * x_tile_bytes + 2 * w_bytes + 2 * C_pad * 4
                 + 2 * TB * C_pad * 4 + TB * H * 4)
    vmem_limit_bytes = int(min(max(vmem_need + (8 << 20), 16 << 20), 48 << 20))

    logits_pad = pl.pallas_call(
        kernel,
        out_shape=jax.ShapeDtypeStruct((B, C_pad), jnp.float32),
        grid_spec=pltpu.PrefetchScalarGridSpec(
            num_scalar_prefetch=0,
            grid=grid,
            in_specs=in_specs,
            out_specs=out_specs,
            scratch_shapes=scratch_shapes),
        compiler_params=pltpu.CompilerParams(
            dimension_semantics=dims,
            vmem_limit_bytes=vmem_limit_bytes),
        cost_estimate=pl.CostEstimate(
            flops=int(flops),
            transcendentals=0,
            bytes_accessed=int(bytes_accessed)),
    )(reprs, w_pad, b_pad)

    return logits_pad[:, :C]


# ----------------------------------------------------------------------------
# Reference + test
# ----------------------------------------------------------------------------
def _reference(reprs, weight, bias, strat):
    x = reprs.astype(jnp.float32)
    if strat == "mean":
        agg = jnp.mean(x, axis=1)
    elif strat == "max":
        agg = jnp.max(x, axis=1)
    elif strat == "last":
        agg = x[:, -1, :]
    elif strat == "first":
        agg = x[:, 0, :]
    else:
        raise ValueError(strat)
    return agg @ weight.astype(jnp.float32).T + bias.astype(jnp.float32)


if __name__ == "__main__":
    key = jax.random.PRNGKey(0)
    ok = True

    # --- Test 1: tiny shapes, f32, all four strategies -----------------------
    B, L, H, C = 2, 8, 32, 5
    k1, k2, k3 = jax.random.split(key, 3)
    reprs = jax.random.normal(k1, (B, L, H), dtype=jnp.float32)
    weight = jax.random.normal(k2, (C, H), dtype=jnp.float32) * 0.1
    bias = jax.random.normal(k3, (C,), dtype=jnp.float32) * 0.1
    for strat in ("mean", "max", "last", "first"):
        logits = jax.block_until_ready(
            cookbook_classification_head(reprs, weight, bias, strat))
        ref = _reference(reprs, weight, bias, strat)
        if logits.shape != (B, C) or not jnp.allclose(logits, ref,
                                                      atol=1e-4, rtol=1e-4):
            ok = False
            print(f"MISMATCH (test1) strat={strat}")

    # --- Test 2: bf16 activations, multiple batch & sequence tiles -----------
    B2, L2, H2, C2 = 16, 32, 128, 5
    k4, k5, k6 = jax.random.split(jax.random.PRNGKey(1), 3)
    reprs2 = jax.random.normal(k4, (B2, L2, H2), dtype=jnp.float32
                               ).astype(jnp.bfloat16)
    weight2 = jax.random.normal(k5, (C2, H2), dtype=jnp.float32) * 0.05
    bias2 = jax.random.normal(k6, (C2,), dtype=jnp.float32) * 0.05
    for strat in ("mean", "max", "last", "first"):
        logits2 = jax.block_until_ready(
            cookbook_classification_head(reprs2, weight2, bias2, strat,
                                         seq_tile=8))
        ref2 = _reference(reprs2, weight2, bias2, strat)
        if logits2.shape != (B2, C2) or not jnp.allclose(logits2, ref2,
                                                         atol=1e-3, rtol=1e-3):
            ok = False
            print(f"MISMATCH (test2) strat={strat}")

    if ok:
        print("KERNEL_OK")
</pallas_src>

<mosaic_0001>
module attributes {stable_mosaic.version = 11 : i64} {
  func.func @_reduce_head_kernel(%arg0: i32, %arg1: i32, %arg2: memref<2x8x32xf32, #tpu.memory_space<vmem>>, %arg3: memref<32x128xf32, #tpu.memory_space<vmem>>, %arg4: memref<1x128xf32, #tpu.memory_space<vmem>>, %arg5: memref<2x128xf32, #tpu.memory_space<vmem>>, %arg6: memref<2x32xf32, #tpu.memory_space<vmem>>) attributes {dimension_semantics = [#tpu.dimension_semantics<parallel>, #tpu.dimension_semantics<arbitrary>], iteration_bounds = array<i64: 1, 1>, scalar_prefetch = 0 : i64, scratch_operands = 1 : i64, tpu.core_type = #tpu.core_type<tc>, window_params = [{transform_indices = @transform_0, window_bounds = array<i64: 2, 8, 32>}, {pipeline_mode = #tpu.pipeline_mode<synchronous>, transform_indices = @transform_1, window_bounds = array<i64: 32, 128>}, {pipeline_mode = #tpu.pipeline_mode<synchronous>, transform_indices = @transform_2, window_bounds = array<i64: 1, 128>}, {transform_indices = @transform_3, window_bounds = array<i64: 2, 128>}]} {
    %c0_i32 = arith.constant 0 : i32
    %0 = arith.cmpi eq, %arg1, %c0_i32 : i32
    %1 = arith.extui %0 : i1 to i32
    %c0_i32_0 = arith.constant 0 : i32
    %2 = arith.cmpi ne, %1, %c0_i32_0 : i32
    scf.if %2 {
      %cst_9 = arith.constant 0.000000e+00 : f32
      %11 = vector.broadcast %cst_9 : f32 to vector<2x32xf32>
      %c0_10 = arith.constant 0 : index
      %c0_11 = arith.constant 0 : index
      %12 = vector.load %arg6[%c0_10, %c0_11] : memref<2x32xf32, #tpu.memory_space<vmem>>, vector<2x32xf32>
      tpu.vector_store %arg6[%c0_10, %c0_11], %11 {strides = array<i32>} : memref<2x32xf32, #tpu.memory_space<vmem>>, vector<2x32xf32>,
    } else {
    }
    %c0 = arith.constant 0 : index
    %c0_1 = arith.constant 0 : index
    %c0_2 = arith.constant 0 : index
    %3 = vector.load %arg2[%c0, %c0_1, %c0_2] : memref<2x8x32xf32, #tpu.memory_space<vmem>>, vector<2x8x32xf32>
    %c0_3 = arith.constant 0 : index
    %c0_4 = arith.constant 0 : index
    %4 = vector.load %arg6[%c0_3, %c0_4] : memref<2x32xf32, #tpu.memory_space<vmem>>, vector<2x32xf32>
    %cst = arith.constant dense<0.000000e+00> : vector<2x32xf32>
    %5 = vector.multi_reduction <add>, %3, %cst [1] : vector<2x8x32xf32> to vector<2x32xf32>
    %6 = arith.addf %4, %5 : vector<2x32xf32>
    %c0_5 = arith.constant 0 : index
    %c0_6 = arith.constant 0 : index
    %7 = vector.load %arg6[%c0_5, %c0_6] : memref<2x32xf32, #tpu.memory_space<vmem>>, vector<2x32xf32>
    tpu.vector_store %arg6[%c0_5, %c0_6], %6 {strides = array<i32>} : memref<2x32xf32, #tpu.memory_space<vmem>>, vector<2x32xf32>,
    %c0_i32_7 = arith.constant 0 : i32
    %8 = arith.cmpi eq, %arg1, %c0_i32_7 : i32
    %9 = arith.extui %8 : i1 to i32
    %c0_i32_8 = arith.constant 0 : i32
    %10 = arith.cmpi ne, %9, %c0_i32_8 : i32
    scf.if %10 {
      %c0_9 = arith.constant 0 : index
      %c0_10 = arith.constant 0 : index
      %11 = vector.load %arg6[%c0_9, %c0_10] : memref<2x32xf32, #tpu.memory_space<vmem>>, vector<2x32xf32>
      %cst_11 = arith.constant 1.250000e-01 : f32
      %12 = vector.broadcast %cst_11 : f32 to vector<2x32xf32>
      %13 = arith.mulf %11, %12 : vector<2x32xf32>
      %c0_12 = arith.constant 0 : index
      %c0_13 = arith.constant 0 : index
      %14 = vector.load %arg3[%c0_12, %c0_13] : memref<32x128xf32, #tpu.memory_space<vmem>>, vector<32x128xf32>
      %c0_14 = arith.constant 0 : index
      %c0_15 = arith.constant 0 : index
      %15 = vector.load %arg4[%c0_14, %c0_15] : memref<1x128xf32, #tpu.memory_space<vmem>>, vector<1x128xf32>
      %cst_16 = arith.constant dense<0.000000e+00> : vector<2x128xf32>
      %16 = tpu.matmul %13, %14, %cst_16 {dimension_numbers = #tpu.dot_dimension_numbers<[1], [0], [0], [1], [0, 0, 1, 1], [], []>} : vector<2x32xf32>, vector<32x128xf32>, vector<2x128xf32> -> vector<2x128xf32>
      %17 = vector.broadcast %15 : vector<1x128xf32> to vector<2x128xf32>
      %18 = arith.addf %16, %17 : vector<2x128xf32>
      %c0_17 = arith.constant 0 : index
      %c0_18 = arith.constant 0 : index
      %19 = vector.load %arg5[%c0_17, %c0_18] : memref<2x128xf32, #tpu.memory_space<vmem>>, vector<2x128xf32>
      tpu.vector_store %arg5[%c0_17, %c0_18], %18 {strides = array<i32>} : memref<2x128xf32, #tpu.memory_space<vmem>>, vector<2x128xf32>,
    } else {
    }
    return
  }
  func.func @transform_0(%arg0: i32, %arg1: i32) -> (i32, i32, i32) {
    %c0_i32 = arith.constant 0 : i32
    %c0_i32_0 = arith.constant 0 : i32
    return %arg0, %arg1, %c0_i32 : i32, i32, i32
  }
  func.func @transform_1(%arg0: i32, %arg1: i32) -> (i32, i32) {
    %c0_i32 = arith.constant 0 : i32
    %c0_i32_0 = arith.constant 0 : i32
    %c0_i32_1 = arith.constant 0 : i32
    return %c0_i32, %c0_i32_0 : i32, i32
  }
  func.func @transform_2(%arg0: i32, %arg1: i32) -> (i32, i32) {
    %c0_i32 = arith.constant 0 : i32
    %c0_i32_0 = arith.constant 0 : i32
    %c0_i32_1 = arith.constant 0 : i32
    return %c0_i32, %c0_i32_0 : i32, i32
  }
  func.func @transform_3(%arg0: i32, %arg1: i32) -> (i32, i32) {
    %c0_i32 = arith.constant 0 : i32
    %c0_i32_0 = arith.constant 0 : i32
    return %arg0, %c0_i32 : i32, i32
  }
}

</mosaic_0001>

<llo_original>
// kernel: tpu_custom_call.1
$region0: #{tpu_custom_call.1}
  #allocation0 [shape = 'u32[]', space=smem, size = 0x4, offset = 0x4, fixed_abs, tag = 'smem constant byte address 0x4 - core index']
  #allocation1 [shape = 'u32[72,128]{1,0:T(1,128)}', space=vmem, size = 0x9000, scoped, tag = 'internal scratch']
  #allocation2 [shape = 'f32[2,32]{1,0:T(2,128)}', space=vmem, size = 0x400, scoped, tag = 'scratch operand']
  %s0 = inlined_call_operand.hbm [shape: f32[2,8,32], index: 0, kind: input, shape index: {}]
  %s1 = inlined_call_operand.hbm [shape: f32[32,128], index: 1, kind: input, shape index: {}]
  %s2 = inlined_call_operand.vmem [shape: f32[1,128], index: 2, kind: input, shape index: {}]
  %s3 = inlined_call_operand.hbm [shape: f32[2,128], index: 3, kind: output, shape index: {}]
  %s4 = sld [smem:[#allocation0]]
  $region38: #{tpu_custom_call.1} parent=0
    _
  %s6 = ssub.s32 1, %s4
  %s7 = scalar_select 0, %s6, %s4
  $region1: #{tpu_custom_call.1} parent=0
    #allocation3 [shape = 'u8[8192]{0}', space=vmem, size = 0x2000, scoped, tag = 'input window, operand 0, single buffered']
    #allocation4 [shape = 's32[1]{0}', space=sflag, size = 0x4, scoped, tag = 'scoped memory for tpu_custom_call.1']
    #allocation5 [shape = 's32[1]{0}', space=sflag, size = 0x4, scoped, tag = 'scoped memory for tpu_custom_call.1']
    #allocation6 [shape = 'u8[16384]{0}', space=vmem, size = 0x4000, scoped, tag = 'input window, operand 1, single buffered']
    #allocation7 [shape = 's32[1]{0}', space=sflag, size = 0x4, scoped, tag = 'scoped memory for tpu_custom_call.1']
    #allocation8 [shape = 'u8[1024]{0}', space=vmem, size = 0x400, scoped, tag = 'output window, operand 0, single buffered']
    %8 = vsyncpa [#allocation4], 0
    %9 = vsyncpa [#allocation7], 0
    %10 = vsyncpa [#allocation5], 0
    // Predicated region
    $region2: #{tpu_custom_call.1} parent=1 // pred_check
      _
    $region3: #{tpu_custom_call.1} parent=1 // pred_check_branch
      %12 = sbr.rel (0) target = $region5
    $region4: #{tpu_custom_call.1} parent=1 // pred_region
      %14 = vsyncadd [#allocation4], 0
      %s15 = sshll.u32 %s0, 4
      %s16 = int_to_ptr.hbm [resolvable:$true] %s15
      %s17 = sshll.u32 [#allocation3], 4
      %s18 = int_to_ptr.vmem [resolvable:$true] %s17
      %23 = dma.hbm_to_vmem [thread:$0]  %s16, 256, %s18, [#allocation4], 128, 128, 8
    $region5: #{tpu_custom_call.1} parent=1 // pred_fallthru
      _
    // Predicated region
    $region6: #{tpu_custom_call.1} parent=1 // pred_check
      _
    $region7: #{tpu_custom_call.1} parent=1 // pred_check_branch
      %25 = sbr.rel (0) target = $region9
    $region8: #{tpu_custom_call.1} parent=1 // pred_region
      %27 = vsyncadd [#allocation7], 0
      %s28 = sshll.u32 %s1, 4
      %s29 = int_to_ptr.hbm [resolvable:$true] %s28
      %s30 = sshll.u32 [#allocation6], 4
      %s31 = int_to_ptr.vmem [resolvable:$true] %s30
      %36 = dma.hbm_to_vmem [thread:$0]  %s29, 512, %s31, [#allocation7], 128, 128, 8
    $region9: #{tpu_custom_call.1} parent=1 // pred_fallthru
      _
    // Predicated region
    $region10: #{tpu_custom_call.1} parent=1 // pred_check
      _
    $region11: #{tpu_custom_call.1} parent=1 // pred_check_branch
      %38 = sbr.rel (0) target = $region13
    $region12: #{tpu_custom_call.1} parent=1 // pred_region
      _
    $region13: #{tpu_custom_call.1} parent=1 // pred_fallthru
      _
    // Predicated region
    $region14: #{tpu_custom_call.1} parent=1 // pred_check
      _
    $region15: #{tpu_custom_call.1} parent=1 // pred_check_branch
      %40 = sbr.rel (0) target = $region17
    $region16: #{tpu_custom_call.1} parent=1 // pred_region
      %42 = dma.done [#allocation4], 256
    $region17: #{tpu_custom_call.1} parent=1 // pred_fallthru
      _
    // Predicated region
    $region18: #{tpu_custom_call.1} parent=1 // pred_check
      _
    $region19: #{tpu_custom_call.1} parent=1 // pred_check_branch
      %44 = sbr.rel (0) target = $region21
    $region20: #{tpu_custom_call.1} parent=1 // pred_region
      %46 = dma.done [#allocation7], 512
    $region21: #{tpu_custom_call.1} parent=1 // pred_fallthru
      _
    %p47 = scmp.eq.s32.totalorder 0, 0
    // Predicated region
    $region22: #{tpu_custom_call.1} parent=1 // pred_check
      %p48 = pneg %p47
    $region23: #{tpu_custom_call.1} parent=1 // pred_check_branch
      %50 = sbr.rel (%p48) target = $region25
    $region24: #{tpu_custom_call.1} parent=1 // pred_region
      %vm51 = vcmask 254976
      %52 = vst.msk [vmem:[#allocation2] sm:$0x3] %vm51, 0.0
    $region25: #{tpu_custom_call.1} parent=1 // pred_fallthru
      _
    %v53 = vld [vmem:[#allocation3] sm:$0xff]
    %v54 = vld [vmem:[#allocation3 + $0x8] sm:$0xff]
    %v55 = vld [vmem:[#allocation2] sm:$0x3]
    %vm56 = vcmask 261120
    %v57 = vsel %vm56, %v53, 0.0
    %v58 = vrot.slane %v57, 4
    %v59 = vadd.f32 %v57, %v58
    %v60 = vrot.slane %v59, 2
    %v61 = vadd.f32 %v59, %v60
    %v62 = vrot.slane %v61, 1
    %v63 = vadd.f32 %v61, %v62
    %v64 = vsel %vm56, %v54, 0.0
    %v65 = vrot.slane %v64, 4
    %v66 = vadd.f32 %v64, %v65
    %v67 = vrot.slane %v66, 2
    %v68 = vadd.f32 %v66, %v67
    %v69 = vrot.slane %v68, 1
    %v70 = vadd.f32 %v68, %v69
    %vm73 = vcmask 1041409
    %v74 = vsel %vm73, %v70, %v63
    %v76 = vadd.f32 %v55, %v74
    %vm77 = vcmask 254976
    %78 = vst.msk [vmem:[#allocation2] sm:$0x3] %vm77, %v76
    // Predicated region
    $region26: #{tpu_custom_call.1} parent=1 // pred_check
      %p79 = pneg %p47
    $region27: #{tpu_custom_call.1} parent=1 // pred_check_branch
      %81 = sbr.rel (%p79) target = $region29
    $region28: #{tpu_custom_call.1} parent=1 // pred_region
      %v82 = vld [vmem:[#allocation2] sm:$0x3]
      %v83 = vmul.f32 %v82, 0.125
      %v84 = vld [vmem:[#allocation6] sm:$0xff]
      %v85 = vld [vmem:[#allocation6 + $0x8] sm:$0xff]
      %v86 = vld [vmem:[#allocation6 + $0x10] sm:$0xff]
      %v87 = vld [vmem:[#allocation6 + $0x18] sm:$0xff]
      %v88 = vld [vmem:[%s2] sm:$0x1]
      %v90 = vperm.slane %v88, 0
      %v93 = vsel %vm56, %v83, 0
      %95 = vmatpush.msra.mxu0 0.0
      %96 = vmatpush.msra.mxu0 0.0
      %97 = vmatpush.msra.mxu0 0.0
      %98 = vmatpush.msra.mxu0 0.0
      %99 = vmatpush.msra.mxu0 0.0
      %100 = vmatpush.msra.mxu0 0.0
      %101 = vmatpush.msra.mxu0 0.0
      %102 = vmatpush.msra.mxu0 0.0
      %103 = vmatpush.msra.mxu0 0.0
      %104 = vmatpush.msra.mxu0 0.0
      %105 = vmatpush.msra.mxu0 0.0
      %106 = vmatpush.msra.mxu0 0.0
      %107 = vmatpush.msra.mxu0 %v87
      %108 = vmatpush.msra.mxu0 %v86
      %109 = vmatpush.msra.mxu0 %v85
      %110 = vmatpush.msra.mxu0 %v84
      %111 = vmatmul.f32.gmra.mxu0 %v93
      %v112 = vpop.f32.mrf.mxu0
      %v113 = vadd.f32 %v90, %v112
      %114 = vdwg.mxu0
      %115 = vst [vmem:[#allocation8] sm:$0x3] %v113
    $region29: #{tpu_custom_call.1} parent=1 // pred_fallthru
      _
    // Predicated region
    $region30: #{tpu_custom_call.1} parent=1 // pred_check
      _
    $region31: #{tpu_custom_call.1} parent=1 // pred_check_branch
      %117 = sbr.rel (0) target = $region33
    $region32: #{tpu_custom_call.1} parent=1 // pred_region
      %119 = vsyncadd [#allocation5], 0
      %s121 = sshll.u32 [#allocation8], 4
      %s122 = int_to_ptr.vmem [resolvable:$true] %s121
      %s123 = sshll.u32 %s3, 4
      %s124 = int_to_ptr.hbm [resolvable:$true] %s123
      %126 = dma.vmem_to_hbm [thread:$0]  %s122, 32, %s124, [#allocation5]
    $region33: #{tpu_custom_call.1} parent=1 // pred_fallthru
      _
    // Predicated region
    $region34: #{tpu_custom_call.1} parent=1 // pred_check
      _
    $region35: #{tpu_custom_call.1} parent=1 // pred_check_branch
      %128 = sbr.rel (0) target = $region37
    $region36: #{tpu_custom_call.1} parent=1 // pred_region
      %130 = dma.done [#allocation5], 32
    $region37: #{tpu_custom_call.1} parent=1 // pred_fallthru
      _
    %131 = vsyncpa [#allocation4], 1
    %132 = vsyncpa [#allocation7], 1
    %133 = vsyncpa [#allocation5], 1

</llo_original>
